<compile_context>
chip_gen: v6e
topology: v6e:2x2x1
jax: 0.10.0
libtpu: 0.0.40
codegen_flags: <defaults>
</compile_context>

<pallas_src>
import functools

import jax
import jax.numpy as jnp
from jax.experimental import pallas as pl
from jax.experimental.pallas import tpu as pltpu

LANES = 128      # vreg lane width
SUBLANES = 8     # f32 vreg sublanes


def _cdiv(a, b):
    return -(-a // b)


def _round_up(x, m):
    return _cdiv(x, m) * m


def _device_kind():
    try:
        return (jax.devices()[0].device_kind or "").lower()
    except Exception:
        return ""


def _policy_loss_kernel(new_ref, old_ref, adv_ref, out_ref, *, eps, steps,
                        num_blocks, valid_rows, guard_oob_slot,
                        mask_tail_rows):
    p = pl.program_id(0)
    s = pl.program_id(1)

    # Zero this partial's resident (8,128) accumulator at the start of its
    # reduction pass (inner grid axis is the reduction axis).
    @pl.when(s == 0)
    def _():
        out_ref[...] = jnp.zeros_like(out_ref)

    tm = new_ref.shape[0]

    def _accumulate():
        diff = new_ref[...].astype(jnp.float32) - old_ref[...].astype(jnp.float32)
        adv = adv_ref[...].astype(jnp.float32)

        if mask_tail_rows:
            # The final block is partial: rows past `valid_rows` hold
            # unspecified VMEM data.  Mask the *inputs* before exp/multiply
            # (exp of garbage can be inf, and inf * 0 = nan).
            block = p * steps + s
            row_ids = block * tm + jax.lax.broadcasted_iota(
                jnp.int32, (tm, LANES), 0)
            valid = row_ids < valid_rows
            diff = jnp.where(valid, diff, 0.0)
            adv = jnp.where(valid, adv, 0.0)

        ratio = jnp.exp(diff)                              # EUP exp
        clipped = jnp.clip(ratio, 1.0 - eps, 1.0 + eps)    # VPU min/max
        surr = jnp.minimum(ratio * adv, clipped * adv)     # VPU

        # Fold the (tm, 128) tile into the (8, 128) accumulator with
        # vreg-wise adds only (tile-aligned reshape; no cross-lane XLU reduce
        # on the per-step path).  A few independent chains keep the serial
        # vadd chain short for large tiles.
        t3 = surr.reshape(tm // SUBLANES, SUBLANES, LANES)
        nchunks = t3.shape[0]
        fold = 4 if (nchunks % 4 == 0 and nchunks >= 8) else 1
        if fold > 1:
            csize = nchunks // fold
            parts = [t3[i * csize:(i + 1) * csize].sum(axis=0)
                     for i in range(fold)]
            tile_sum = functools.reduce(lambda a, b: a + b, parts)
        else:
            tile_sum = t3.sum(axis=0)
        out_ref[...] += tile_sum

    if guard_oob_slot:
        # Grid slots past the last block clamp their DMA index in the
        # index_map (re-reading a valid block) and skip the accumulate here.
        pl.when(p * steps + s < num_blocks)(_accumulate)
    else:
        _accumulate()


def policy_loss(new_actor_log_probs, old_actor_log_probs, advantage,
                action_mask=None, *, eps=0.2, block_rows=None):
    """Pallas TPU implementation of PolicyLoss.forward. Returns scalar f32."""
    # action_mask is unused by the reference forward pass; accepted for parity.
    del action_mask
    assert (new_actor_log_probs.shape == old_actor_log_probs.shape
            == advantage.shape)

    n = new_actor_log_probs.size
    if n == 0:
        return jnp.float32(float("nan"))  # torch .mean() of an empty tensor

    kind = _device_kind()
    multi_tc = ("v7" in kind) or ("tpu7" in kind)     # 2 TensorCores / chip
    num_partials = 2 if multi_tc else 1
    # 8192 rows = 4 MiB/input/buffer (24 MiB double-buffered) amortizes the
    # ~0.35 us per-step overhead on v6e/v7x HBM; v5e gains nothing past 4096.
    tm_max = 4096 if "v5" in kind else 8192
    if block_rows is not None:                         # test/override hook
        tm_max = max(SUBLANES, _round_up(int(block_rows), SUBLANES))

    # Lane-dense (rows, 128) view.  Reshape is free; only element counts that
    # are not a multiple of 128 pay a tail-only pad (zeros are exact:
    # exp(0)=1, adv=0 => contribution 0).
    rem = n % LANES

    def _prep(x):
        xf = jnp.ravel(x)
        if rem:
            xf = jnp.pad(xf, (0, LANES - rem))
        return xf.reshape(-1, LANES)

    new2d = _prep(new_actor_log_probs)
    old2d = _prep(old_actor_log_probs)
    adv2d = _prep(advantage)
    rows = new2d.shape[0]

    tm = min(tm_max, _round_up(_cdiv(rows, num_partials), SUBLANES))
    num_blocks = _cdiv(rows, tm)
    steps = _cdiv(num_blocks, num_partials)
    total_slots = num_partials * steps

    guard_oob_slot = total_slots != num_blocks
    mask_tail_rows = (rows % tm) != 0

    if guard_oob_slot:
        in_map = lambda p, s: (jnp.minimum(p * steps + s, num_blocks - 1), 0)
    else:
        in_map = lambda p, s: (p * steps + s, 0)
    in_spec = pl.BlockSpec((tm, LANES), in_map)
    out_spec = pl.BlockSpec((SUBLANES, LANES), lambda p, s: (p, 0))

    itembytes = max(jnp.dtype(a.dtype).itemsize for a in (new2d, old2d, adv2d))
    in_vmem = 3 * 2 * tm * LANES * itembytes          # 3 inputs, 2 buffers
    vmem_limit = int(max(32 << 20, in_vmem + (16 << 20)))  # <= 40 MiB @ tm=8192

    lead_sem = pltpu.CORE_PARALLEL if num_partials > 1 else pltpu.ARBITRARY

    kernel = functools.partial(
        _policy_loss_kernel, eps=float(eps), steps=steps,
        num_blocks=num_blocks, valid_rows=rows,
        guard_oob_slot=guard_oob_slot, mask_tail_rows=mask_tail_rows)

    partials = pl.pallas_call(
        kernel,
        out_shape=jax.ShapeDtypeStruct((num_partials * SUBLANES, LANES),
                                       jnp.float32),
        grid=(num_partials, steps),
        in_specs=[in_spec, in_spec, in_spec],
        out_specs=out_spec,
        compiler_params=pltpu.CompilerParams(
            dimension_semantics=(lead_sem, pltpu.ARBITRARY),
            vmem_limit_bytes=vmem_limit),
    )(new2d, old2d, adv2d)

    # Tiny (num_partials*8*128-element) final reduce + mean scaling in XLA.
    # TODO(synk): ideal end-state is fusing this loss into the log-prob
    # producer (optionally with bf16 streams) so the three (batch, seq)
    # inputs never round-trip HBM — the only remaining lever once DMA-bound.
    return -jnp.sum(partials) / jnp.float32(n)


if __name__ == "__main__":
    key = jax.random.PRNGKey(0)
    k1, k2, k3 = jax.random.split(key, 3)

    def ref_loss(nlp, olp, adv, eps=0.2):
        ratio = jnp.exp(nlp - olp)
        surr = jnp.minimum(ratio * adv, jnp.clip(ratio, 1 - eps, 1 + eps) * adv)
        return jnp.mean(-surr)

    # (batch, seq) log-probs / advantages — lane-aligned fast path (no pad).
    batch, seq = 8, 128
    new_lp = jax.random.normal(k1, (batch, seq), jnp.float32) * 0.1 - 1.0
    old_lp = jax.random.normal(k2, (batch, seq), jnp.float32) * 0.1 - 1.0
    advantage = jax.random.normal(k3, (batch, seq), jnp.float32)
    action_mask = jnp.ones((batch, seq), jnp.float32)  # unused by forward

    loss = jax.block_until_ready(
        policy_loss(new_lp, old_lp, advantage, action_mask, eps=0.2))
    ref = ref_loss(new_lp, old_lp, advantage)
    assert jnp.allclose(loss, ref, atol=1e-5, rtol=1e-5), (loss, ref)

    # Ragged shape: exercises lane-tail pad + in-kernel partial-block masking.
    n2 = jax.random.normal(k1, (5, 100), jnp.float32) * 0.3
    o2 = jax.random.normal(k2, (5, 100), jnp.float32) * 0.3
    a2 = jax.random.normal(k3, (5, 100), jnp.float32)
    loss2 = jax.block_until_ready(policy_loss(n2, o2, a2, None, eps=0.2))
    ref2 = ref_loss(n2, o2, a2)
    assert jnp.allclose(loss2, ref2, atol=1e-5, rtol=1e-5), (loss2, ref2)

    # Multi-step reduction path (forced tiny row tile) + partial last block.
    n3 = jax.random.normal(k1, (7, 300), jnp.float32) * 0.3
    o3 = jax.random.normal(k2, (7, 300), jnp.float32) * 0.3
    a3 = jax.random.normal(k3, (7, 300), jnp.float32)
    loss3 = jax.block_until_ready(
        policy_loss(n3, o3, a3, None, eps=0.2, block_rows=8))
    ref3 = ref_loss(n3, o3, a3)
    assert jnp.allclose(loss3, ref3, atol=1e-5, rtol=1e-5), (loss3, ref3)

    print("KERNEL_OK")
</pallas_src>

<mosaic_0001>
module attributes {stable_mosaic.version = 11 : i64} {
  func.func @_policy_loss_kernel(%arg0: i32, %arg1: i32, %arg2: memref<8x128xf32, #tpu.memory_space<vmem>>, %arg3: memref<8x128xf32, #tpu.memory_space<vmem>>, %arg4: memref<8x128xf32, #tpu.memory_space<vmem>>, %arg5: memref<8x128xf32, #tpu.memory_space<vmem>>) attributes {dimension_semantics = [#tpu.dimension_semantics<arbitrary>, #tpu.dimension_semantics<arbitrary>], iteration_bounds = array<i64: 1, 1>, scalar_prefetch = 0 : i64, scratch_operands = 0 : i64, tpu.core_type = #tpu.core_type<tc>, window_params = [{transform_indices = @transform_0, window_bounds = array<i64: 8, 128>}, {transform_indices = @transform_1, window_bounds = array<i64: 8, 128>}, {transform_indices = @transform_2, window_bounds = array<i64: 8, 128>}, {transform_indices = @transform_3, window_bounds = array<i64: 8, 128>}]} {
    %c0_i32 = arith.constant 0 : i32
    %0 = arith.cmpi eq, %arg1, %c0_i32 : i32
    %1 = arith.extui %0 : i1 to i32
    %c0_i32_0 = arith.constant 0 : i32
    %2 = arith.cmpi ne, %1, %c0_i32_0 : i32
    scf.if %2 {
      %cst_12 = arith.constant 0.000000e+00 : f32
      %20 = vector.broadcast %cst_12 : f32 to vector<8x128xf32>
      %c0_13 = arith.constant 0 : index
      %c0_14 = arith.constant 0 : index
      %21 = vector.load %arg5[%c0_13, %c0_14] : memref<8x128xf32, #tpu.memory_space<vmem>>, vector<8x128xf32>
      tpu.vector_store %arg5[%c0_13, %c0_14], %20 {strides = array<i32>} : memref<8x128xf32, #tpu.memory_space<vmem>>, vector<8x128xf32>,
    } else {
    }
    %c0 = arith.constant 0 : index
    %c0_1 = arith.constant 0 : index
    %3 = vector.load %arg2[%c0, %c0_1] : memref<8x128xf32, #tpu.memory_space<vmem>>, vector<8x128xf32>
    %c0_2 = arith.constant 0 : index
    %c0_3 = arith.constant 0 : index
    %4 = vector.load %arg3[%c0_2, %c0_3] : memref<8x128xf32, #tpu.memory_space<vmem>>, vector<8x128xf32>
    %5 = arith.subf %3, %4 : vector<8x128xf32>
    %c0_4 = arith.constant 0 : index
    %c0_5 = arith.constant 0 : index
    %6 = vector.load %arg4[%c0_4, %c0_5] : memref<8x128xf32, #tpu.memory_space<vmem>>, vector<8x128xf32>
    %7 = math.exp %5 : vector<8x128xf32>
    %cst = arith.constant 8.000000e-01 : f32
    %cst_6 = arith.constant 1.200000e+00 : f32
    %8 = vector.broadcast %cst : f32 to vector<8x128xf32>
    %9 = arith.maximumf %8, %7 : vector<8x128xf32>
    %10 = vector.broadcast %cst_6 : f32 to vector<8x128xf32>
    %11 = arith.minimumf %10, %9 : vector<8x128xf32>
    %12 = arith.mulf %7, %6 : vector<8x128xf32>
    %13 = arith.mulf %11, %6 : vector<8x128xf32>
    %14 = arith.minimumf %12, %13 : vector<8x128xf32>
    %15 = vector.shape_cast %14 : vector<8x128xf32> to vector<1x8x128xf32>
    %cst_7 = arith.constant dense<0.000000e+00> : vector<8x128xf32>
    %16 = vector.multi_reduction <add>, %15, %cst_7 [0] : vector<1x8x128xf32> to vector<8x128xf32>
    %c0_8 = arith.constant 0 : index
    %c0_9 = arith.constant 0 : index
    %17 = vector.load %arg5[%c0_8, %c0_9] : memref<8x128xf32, #tpu.memory_space<vmem>>, vector<8x128xf32>
    %18 = arith.addf %17, %16 : vector<8x128xf32>
    %c0_10 = arith.constant 0 : index
    %c0_11 = arith.constant 0 : index
    %19 = vector.load %arg5[%c0_10, %c0_11] : memref<8x128xf32, #tpu.memory_space<vmem>>, vector<8x128xf32>
    tpu.vector_store %arg5[%c0_10, %c0_11], %18 {strides = array<i32>} : memref<8x128xf32, #tpu.memory_space<vmem>>, vector<8x128xf32>,
    return
  }
  func.func @transform_0(%arg0: i32, %arg1: i32) -> (i32, i32) {
    %c1_i32 = arith.constant 1 : i32
    %0 = arith.muli %arg0, %c1_i32 : i32
    %1 = arith.addi %0, %arg1 : i32
    %c0_i32 = arith.constant 0 : i32
    %c0_i32_0 = arith.constant 0 : i32
    return %1, %c0_i32 : i32, i32
  }
  func.func @transform_1(%arg0: i32, %arg1: i32) -> (i32, i32) {
    %c1_i32 = arith.constant 1 : i32
    %0 = arith.muli %arg0, %c1_i32 : i32
    %1 = arith.addi %0, %arg1 : i32
    %c0_i32 = arith.constant 0 : i32
    %c0_i32_0 = arith.constant 0 : i32
    return %1, %c0_i32 : i32, i32
  }
  func.func @transform_2(%arg0: i32, %arg1: i32) -> (i32, i32) {
    %c1_i32 = arith.constant 1 : i32
    %0 = arith.muli %arg0, %c1_i32 : i32
    %1 = arith.addi %0, %arg1 : i32
    %c0_i32 = arith.constant 0 : i32
    %c0_i32_0 = arith.constant 0 : i32
    return %1, %c0_i32 : i32, i32
  }
  func.func @transform_3(%arg0: i32, %arg1: i32) -> (i32, i32) {
    %c0_i32 = arith.constant 0 : i32
    %c0_i32_0 = arith.constant 0 : i32
    return %arg0, %c0_i32 : i32, i32
  }
}

</mosaic_0001>

<llo_original>
// kernel: tpu_custom_call.1
$region0: #{tpu_custom_call.1}
  #allocation0 [shape = 'u32[]', space=smem, size = 0x4, offset = 0x4, fixed_abs, tag = 'smem constant byte address 0x4 - core index']
  #allocation1 [shape = 'u32[144,128]{1,0:T(1,128)}', space=vmem, size = 0x12000, scoped, tag = 'internal scratch']
  %s0 = inlined_call_operand.hbm [shape: f32[8,128], index: 0, kind: input, shape index: {}]
  %s1 = inlined_call_operand.hbm [shape: f32[8,128], index: 1, kind: input, shape index: {}]
  %s2 = inlined_call_operand.hbm [shape: f32[8,128], index: 2, kind: input, shape index: {}]
  %s3 = inlined_call_operand.hbm [shape: f32[8,128], index: 3, kind: output, shape index: {}]
  %s4 = sld [smem:[#allocation0]]
  $region38: #{tpu_custom_call.1} parent=0
    _
  %s6 = ssub.s32 1, %s4
  %s7 = scalar_select 0, %s6, %s4
  $region1: #{tpu_custom_call.1} parent=0
    #allocation2 [shape = 'u8[4096]{0}', space=vmem, size = 0x1000, scoped, tag = 'input window, operand 0, single buffered']
    #allocation3 [shape = 's32[1]{0}', space=sflag, size = 0x4, scoped, tag = 'scoped memory for tpu_custom_call.1']
    #allocation4 [shape = 's32[1]{0}', space=sflag, size = 0x4, scoped, tag = 'scoped memory for tpu_custom_call.1']
    #allocation5 [shape = 'u8[4096]{0}', space=vmem, size = 0x1000, scoped, tag = 'input window, operand 1, single buffered']
    #allocation6 [shape = 's32[1]{0}', space=sflag, size = 0x4, scoped, tag = 'scoped memory for tpu_custom_call.1']
    #allocation7 [shape = 'u8[4096]{0}', space=vmem, size = 0x1000, scoped, tag = 'input window, operand 2, single buffered']
    #allocation8 [shape = 'u8[4096]{0}', space=vmem, size = 0x1000, scoped, tag = 'output window, operand 0, single buffered']
    %8 = vsyncpa [#allocation3], 0
    %9 = vsyncpa [#allocation6], 0
    %10 = vsyncpa [#allocation4], 0
    // Predicated region
    $region2: #{tpu_custom_call.1} parent=1 // pred_check
      _
    $region3: #{tpu_custom_call.1} parent=1 // pred_check_branch
      %12 = sbr.rel (0) target = $region5
    $region4: #{tpu_custom_call.1} parent=1 // pred_region
      %s13 = sadd.s32 0, 0
      %s15 = ssub.s32 128, 128
      %16 = vsyncadd [#allocation3], %s15
      %s17 = smul.addr %s13, 128
      %s18 = scalar_lea.hbm %s0, %s17
      %s20 = sshll.u32 [#allocation2], 4
      %s21 = int_to_ptr.vmem [resolvable:$true] %s20
      %23 = dma.hbm_to_vmem [thread:$0]  %s18, 128, %s21, [#allocation3]
    $region5: #{tpu_custom_call.1} parent=1 // pred_fallthru
      _
    // Predicated region
    $region6: #{tpu_custom_call.1} parent=1 // pred_check
      _
    $region7: #{tpu_custom_call.1} parent=1 // pred_check_branch
      %25 = sbr.rel (0) target = $region9
    $region8: #{tpu_custom_call.1} parent=1 // pred_region
      %s26 = sadd.s32 0, 0
      %s28 = ssub.s32 128, 128
      %29 = vsyncadd [#allocation6], %s28
      %s30 = smul.addr %s26, 128
      %s31 = scalar_lea.hbm %s1, %s30
      %s33 = sshll.u32 [#allocation5], 4
      %s34 = int_to_ptr.vmem [resolvable:$true] %s33
      %36 = dma.hbm_to_vmem [thread:$0]  %s31, 128, %s34, [#allocation6]
    $region9: #{tpu_custom_call.1} parent=1 // pred_fallthru
      _
    // Predicated region
    $region10: #{tpu_custom_call.1} parent=1 // pred_check
      _
    $region11: #{tpu_custom_call.1} parent=1 // pred_check_branch
      %38 = sbr.rel (0) target = $region13
    $region12: #{tpu_custom_call.1} parent=1 // pred_region
      %s39 = sadd.s32 0, 0
      %s41 = ssub.s32 128, 128
      %42 = vsyncadd [#allocation6], %s41
      %s43 = smul.addr %s39, 128
      %s44 = scalar_lea.hbm %s2, %s43
      %s46 = sshll.u32 [#allocation7], 4
      %s47 = int_to_ptr.vmem [resolvable:$true] %s46
      %49 = dma.hbm_to_vmem [thread:$0]  %s44, 128, %s47, [#allocation6]
    $region13: #{tpu_custom_call.1} parent=1 // pred_fallthru
      _
    // Predicated region
    $region14: #{tpu_custom_call.1} parent=1 // pred_check
      _
    $region15: #{tpu_custom_call.1} parent=1 // pred_check_branch
      %51 = sbr.rel (0) target = $region17
    $region16: #{tpu_custom_call.1} parent=1 // pred_region
      %52 = dma.done [#allocation3], 128
    $region17: #{tpu_custom_call.1} parent=1 // pred_fallthru
      _
    // Predicated region
    $region18: #{tpu_custom_call.1} parent=1 // pred_check
      _
    $region19: #{tpu_custom_call.1} parent=1 // pred_check_branch
      %54 = sbr.rel (0) target = $region21
    $region20: #{tpu_custom_call.1} parent=1 // pred_region
      %55 = dma.done [#allocation6], 128
    $region21: #{tpu_custom_call.1} parent=1 // pred_fallthru
      _
    // Predicated region
    $region22: #{tpu_custom_call.1} parent=1 // pred_check
      _
    $region23: #{tpu_custom_call.1} parent=1 // pred_check_branch
      %57 = sbr.rel (0) target = $region25
    $region24: #{tpu_custom_call.1} parent=1 // pred_region
      %58 = dma.done [#allocation6], 128
    $region25: #{tpu_custom_call.1} parent=1 // pred_fallthru
      _
    %s59 = sadd.s32 0, 0
    %s60 = sadd.s32 0, 0
    %s61 = sadd.s32 0, 0
    %p62 = scmp.eq.s32.totalorder 0, 0
    // Predicated region
    $region26: #{tpu_custom_call.1} parent=1 // pred_check
      %p63 = pneg %p62
    $region27: #{tpu_custom_call.1} parent=1 // pred_check_branch
      %65 = sbr.rel (%p63) target = $region29
    $region28: #{tpu_custom_call.1} parent=1 // pred_region
      %66 = vst [vmem:[#allocation8] sm:$0xff] 0.0
    $region29: #{tpu_custom_call.1} parent=1 // pred_fallthru
      _
    %v67 = vld [vmem:[#allocation2] sm:$0xff]
    %v68 = vld [vmem:[#allocation5] sm:$0xff]
    %v69 = vsub.f32 %v67, %v68
    %v70 = vld [vmem:[#allocation7] sm:$0xff]
    %v71 = vmul.f32 %v69, 1.442695
    %v72 = vpow.pop %v71
    %v73 = vmax.f32 %v72, 0.8
    %v74 = vmin.f32 %v73, 1.2
    %v75 = vmul.f32 %v72, %v70
    %v76 = vmul.f32 %v74, %v70
    %v77 = vmin.f32 %v75, %v76
    %v78 = vadd.f32 %v77, 0.0
    %v79 = vld [vmem:[#allocation8] sm:$0xff]
    %v80 = vadd.f32 %v79, %v78
    %81 = vst [vmem:[#allocation8] sm:$0xff] %v80
    // Predicated region
    $region30: #{tpu_custom_call.1} parent=1 // pred_check
      _
    $region31: #{tpu_custom_call.1} parent=1 // pred_check_branch
      %83 = sbr.rel (0) target = $region33
    $region32: #{tpu_custom_call.1} parent=1 // pred_region
      %s85 = ssub.s32 128, 128
      %86 = vsyncadd [#allocation4], %s85
      %s88 = sshll.u32 [#allocation8], 4
      %s89 = int_to_ptr.vmem [resolvable:$true] %s88
      %91 = dma.vmem_to_hbm [thread:$0]  %s89, 128, %s3, [#allocation4]
    $region33: #{tpu_custom_call.1} parent=1 // pred_fallthru
      _
    // Predicated region
    $region34: #{tpu_custom_call.1} parent=1 // pred_check
      _
    $region35: #{tpu_custom_call.1} parent=1 // pred_check_branch
      %93 = sbr.rel (0) target = $region37
    $region36: #{tpu_custom_call.1} parent=1 // pred_region
      %94 = dma.done [#allocation4], 128
    $region37: #{tpu_custom_call.1} parent=1 // pred_fallthru
      _
    %95 = vsyncpa [#allocation3], 1
    %96 = vsyncpa [#allocation6], 1
    %97 = vsyncpa [#allocation4], 1

</llo_original>
